<compile_context>
chip_gen: v7x
topology: tpu7x:2x2x1
jax: 0.10.0
libtpu: 0.0.40
codegen_flags: <defaults>
</compile_context>

<pallas_src>
import functools

import jax
import jax.numpy as jnp
from jax.experimental import pallas as pl
from jax.experimental.pallas import tpu as pltpu


def _round_up(v, m):
    return ((v + m - 1) // m) * m


def _dqn_kernel(x_ref, w1_ref, b1_ref, w3_ref, b3_ref, w4_ref, b4_ref, o_ref):
    # fc1 + ReLU (bf16 operands, f32 accumulate)
    h = jnp.dot(x_ref[...], w1_ref[...], preferred_element_type=jnp.float32)
    h = jnp.maximum(h + b1_ref[...], 0.0).astype(w3_ref.dtype)
    # fc3 + ReLU
    h = jnp.dot(h, w3_ref[...], preferred_element_type=jnp.float32)
    h = jnp.maximum(h + b3_ref[...], 0.0).astype(w4_ref.dtype)
    # fc4 (no activation); last layer is pre-padded to 128 lanes in the wrapper
    out = jnp.dot(h, w4_ref[...], preferred_element_type=jnp.float32)
    o_ref[...] = (out + b4_ref[...]).astype(o_ref.dtype)


@functools.partial(jax.jit, static_argnames=("batch_tile", "use_bf16"))
def dqn_forward(x, w1, b1, w3, b3, w4, b4, *, batch_tile=None, use_bf16=True):
    """DQN forward pass via a single Pallas kernel.

    x : [B, in_features]
    w1: [in_features, 512]   b1: [1, 512]
    w3: [512, 128]           b3: [1, 128]
    w4: [128, action_space]  b4: [1, action_space]
    returns: [B, action_space] float32
    """
    B, in_features = x.shape
    h1 = w1.shape[1]
    h2 = w3.shape[1]
    action_space = w4.shape[1]

    # ---- lane-dense final layer: pad fc4 to a multiple of 128 output lanes ----
    out_pad = _round_up(max(action_space, 128), 128)
    w4p = jnp.zeros((h2, out_pad), w4.dtype).at[:, :action_space].set(w4)
    b4p = jnp.zeros((1, out_pad), b4.dtype).at[:, :action_space].set(b4)

    # ---- batch tiling: big MXU-friendly tiles; pad B up to a tile multiple ----
    if batch_tile is None:
        batch_tile = min(256, _round_up(B, 8))   # small batches -> one tight tile
    Bp = _round_up(B, batch_tile)
    if Bp != B:
        x = jnp.zeros((Bp, in_features), x.dtype).at[:B].set(x)

    # ---- bf16 matmul operands (accumulation stays f32 inside the kernel) ----
    mm_dtype = jnp.bfloat16 if use_bf16 else jnp.float32
    xc = x.astype(mm_dtype)
    w1c = w1.astype(mm_dtype)
    w3c = w3.astype(mm_dtype)
    w4c = w4p.astype(mm_dtype)
    b1c = b1.astype(jnp.float32)
    b3c = b3.astype(jnp.float32)
    b4c = b4p.astype(jnp.float32)

    grid = (Bp // batch_tile,)

    flops = 2 * Bp * (in_features * h1 + h1 * h2 + h2 * out_pad)
    bytes_accessed = (
        xc.size * xc.dtype.itemsize
        + w1c.size * w1c.dtype.itemsize
        + w3c.size * w3c.dtype.itemsize
        + w4c.size * w4c.dtype.itemsize
        + (b1c.size + b3c.size + b4c.size) * 4
        + Bp * out_pad * 4
    )

    out = pl.pallas_call(
        _dqn_kernel,
        out_shape=jax.ShapeDtypeStruct((Bp, out_pad), jnp.float32),
        grid_spec=pl.GridSpec(
            grid=grid,
            in_specs=[
                pl.BlockSpec((batch_tile, in_features), lambda i: (i, 0)),  # x tile
                pl.BlockSpec((in_features, h1), lambda i: (0, 0)),          # w1 (resident)
                pl.BlockSpec((1, h1), lambda i: (0, 0)),                    # b1
                pl.BlockSpec((h1, h2), lambda i: (0, 0)),                   # w3 (resident)
                pl.BlockSpec((1, h2), lambda i: (0, 0)),                    # b3
                pl.BlockSpec((h2, out_pad), lambda i: (0, 0)),              # w4 padded
                pl.BlockSpec((1, out_pad), lambda i: (0, 0)),               # b4 padded
            ],
            out_specs=pl.BlockSpec((batch_tile, out_pad), lambda i: (i, 0)),
        ),
        compiler_params=pltpu.CompilerParams(
            dimension_semantics=("parallel",),
        ),
        cost_estimate=pl.CostEstimate(
            flops=flops, transcendentals=0, bytes_accessed=bytes_accessed
        ),
    )(xc, w1c, b1c, w3c, b3c, w4c, b4c)

    # Strip batch padding and the lane-padding of the action dimension.
    return out[:B, :action_space]


def init_dqn_params(key, in_features, action_space):
    """PyTorch-style uniform(+-1/sqrt(fan_in)) init, weights in (in, out) layout."""
    def linear(k, fan_in, fan_out):
        kw, kb = jax.random.split(k)
        bound = 1.0 / jnp.sqrt(fan_in)
        w = jax.random.uniform(kw, (fan_in, fan_out), jnp.float32, -bound, bound)
        b = jax.random.uniform(kb, (1, fan_out), jnp.float32, -bound, bound)
        return w, b

    k1, k3, k4 = jax.random.split(key, 3)
    w1, b1 = linear(k1, in_features, 512)
    w3, b3 = linear(k3, 512, 128)
    w4, b4 = linear(k4, 128, action_space)
    return w1, b1, w3, b3, w4, b4


def dqn_reference(x, w1, b1, w3, b3, w4, b4, compute_dtype=jnp.float32):
    """Plain-JAX reference; compute_dtype mirrors the kernel's matmul dtype."""
    cd = compute_dtype
    h = jnp.dot(x.astype(cd), w1.astype(cd), preferred_element_type=jnp.float32) + b1
    h = jnp.maximum(h, 0.0).astype(cd)
    h = jnp.dot(h, w3.astype(cd), preferred_element_type=jnp.float32) + b3
    h = jnp.maximum(h, 0.0).astype(cd)
    return jnp.dot(h, w4.astype(cd), preferred_element_type=jnp.float32) + b4


if __name__ == "__main__":
    # Small config consistent with the module: args.state_data == 'ram',
    # history_length = 4 -> in_features = 4 * 128 = 512; action_space = 6.
    history_length = 4
    in_features = history_length * 128
    action_space = 6
    batch = 8

    key = jax.random.PRNGKey(0)
    kx, kp = jax.random.split(key)
    x = jax.random.normal(kx, (batch, in_features), dtype=jnp.float32)
    params = init_dqn_params(kp, in_features, action_space)

    out = dqn_forward(x, *params)
    out = jax.block_until_ready(out)
    assert out.shape == (batch, action_space)

    # Correctness: match a bf16-matmul / f32-accumulate reference tightly, and
    # the full-f32 PyTorch-semantics reference loosely (bf16 rounding only).
    ref_bf16 = dqn_reference(x, *params, compute_dtype=jnp.bfloat16)
    ref_f32 = dqn_reference(x, *params, compute_dtype=jnp.float32)
    assert jnp.allclose(out, ref_bf16, atol=2e-3, rtol=2e-2), "mismatch vs bf16 reference"
    assert jnp.allclose(out, ref_f32, atol=5e-2, rtol=5e-2), "mismatch vs f32 reference"

    # Exercise the ragged-batch padding path (B not a multiple of 8).
    x_small = jax.random.normal(jax.random.PRNGKey(1), (5, in_features), jnp.float32)
    out_small = jax.block_until_ready(dqn_forward(x_small, *params))
    ref_small = dqn_reference(x_small, *params, compute_dtype=jnp.bfloat16)
    assert out_small.shape == (5, action_space)
    assert jnp.allclose(out_small, ref_small, atol=2e-3, rtol=2e-2), "mismatch (padded batch)"

    print("KERNEL_OK")
</pallas_src>

<mosaic_0001>
module attributes {stable_mosaic.version = 11 : i64} {
  func.func @_dqn_kernel(%arg0: i32, %arg1: memref<8x512xbf16, #tpu.memory_space<vmem>>, %arg2: memref<512x512xbf16, #tpu.memory_space<vmem>>, %arg3: memref<1x512xf32, #tpu.memory_space<vmem>>, %arg4: memref<512x128xbf16, #tpu.memory_space<vmem>>, %arg5: memref<1x128xf32, #tpu.memory_space<vmem>>, %arg6: memref<128x128xbf16, #tpu.memory_space<vmem>>, %arg7: memref<1x128xf32, #tpu.memory_space<vmem>>, %arg8: memref<8x128xf32, #tpu.memory_space<vmem>>) attributes {dimension_semantics = [#tpu.dimension_semantics<parallel>], iteration_bounds = array<i64: 1>, scalar_prefetch = 0 : i64, scratch_operands = 0 : i64, tpu.core_type = #tpu.core_type<tc>, window_params = [{transform_indices = @transform_0, window_bounds = array<i64: 8, 512>}, {pipeline_mode = #tpu.pipeline_mode<synchronous>, transform_indices = @transform_1, window_bounds = array<i64: 512, 512>}, {pipeline_mode = #tpu.pipeline_mode<synchronous>, transform_indices = @transform_2, window_bounds = array<i64: 1, 512>}, {pipeline_mode = #tpu.pipeline_mode<synchronous>, transform_indices = @transform_3, window_bounds = array<i64: 512, 128>}, {pipeline_mode = #tpu.pipeline_mode<synchronous>, transform_indices = @transform_4, window_bounds = array<i64: 1, 128>}, {pipeline_mode = #tpu.pipeline_mode<synchronous>, transform_indices = @transform_5, window_bounds = array<i64: 128, 128>}, {pipeline_mode = #tpu.pipeline_mode<synchronous>, transform_indices = @transform_6, window_bounds = array<i64: 1, 128>}, {transform_indices = @transform_7, window_bounds = array<i64: 8, 128>}]} {
    %c0 = arith.constant 0 : index
    %c0_0 = arith.constant 0 : index
    %0 = vector.load %arg1[%c0, %c0_0] : memref<8x512xbf16, #tpu.memory_space<vmem>>, vector<8x512xbf16>
    %c0_1 = arith.constant 0 : index
    %c0_2 = arith.constant 0 : index
    %1 = vector.load %arg2[%c0_1, %c0_2] : memref<512x512xbf16, #tpu.memory_space<vmem>>, vector<512x512xbf16>
    %cst = arith.constant dense<0.000000e+00> : vector<8x512xf32>
    %2 = tpu.matmul %0, %1, %cst {dimension_numbers = #tpu.dot_dimension_numbers<[1], [0], [0], [1], [0, 0, 1, 1], [], []>} : vector<8x512xbf16>, vector<512x512xbf16>, vector<8x512xf32> -> vector<8x512xf32>
    %c0_3 = arith.constant 0 : index
    %c0_4 = arith.constant 0 : index
    %3 = vector.load %arg3[%c0_3, %c0_4] : memref<1x512xf32, #tpu.memory_space<vmem>>, vector<1x512xf32>
    %4 = vector.broadcast %3 : vector<1x512xf32> to vector<8x512xf32>
    %5 = arith.addf %2, %4 : vector<8x512xf32>
    %cst_5 = arith.constant 0.000000e+00 : f32
    %6 = vector.broadcast %cst_5 : f32 to vector<8x512xf32>
    %7 = arith.maximumf %5, %6 : vector<8x512xf32>
    %8 = arith.truncf %7 : vector<8x512xf32> to vector<8x512xbf16>
    %c0_6 = arith.constant 0 : index
    %c0_7 = arith.constant 0 : index
    %9 = vector.load %arg4[%c0_6, %c0_7] : memref<512x128xbf16, #tpu.memory_space<vmem>>, vector<512x128xbf16>
    %cst_8 = arith.constant dense<0.000000e+00> : vector<8x128xf32>
    %10 = tpu.matmul %8, %9, %cst_8 {dimension_numbers = #tpu.dot_dimension_numbers<[1], [0], [0], [1], [0, 0, 1, 1], [], []>} : vector<8x512xbf16>, vector<512x128xbf16>, vector<8x128xf32> -> vector<8x128xf32>
    %c0_9 = arith.constant 0 : index
    %c0_10 = arith.constant 0 : index
    %11 = vector.load %arg5[%c0_9, %c0_10] : memref<1x128xf32, #tpu.memory_space<vmem>>, vector<1x128xf32>
    %12 = vector.broadcast %11 : vector<1x128xf32> to vector<8x128xf32>
    %13 = arith.addf %10, %12 : vector<8x128xf32>
    %cst_11 = arith.constant 0.000000e+00 : f32
    %14 = vector.broadcast %cst_11 : f32 to vector<8x128xf32>
    %15 = arith.maximumf %13, %14 : vector<8x128xf32>
    %16 = arith.truncf %15 : vector<8x128xf32> to vector<8x128xbf16>
    %c0_12 = arith.constant 0 : index
    %c0_13 = arith.constant 0 : index
    %17 = vector.load %arg6[%c0_12, %c0_13] : memref<128x128xbf16, #tpu.memory_space<vmem>>, vector<128x128xbf16>
    %cst_14 = arith.constant dense<0.000000e+00> : vector<8x128xf32>
    %18 = tpu.matmul %16, %17, %cst_14 {dimension_numbers = #tpu.dot_dimension_numbers<[1], [0], [0], [1], [0, 0, 1, 1], [], []>} : vector<8x128xbf16>, vector<128x128xbf16>, vector<8x128xf32> -> vector<8x128xf32>
    %c0_15 = arith.constant 0 : index
    %c0_16 = arith.constant 0 : index
    %19 = vector.load %arg7[%c0_15, %c0_16] : memref<1x128xf32, #tpu.memory_space<vmem>>, vector<1x128xf32>
    %20 = vector.broadcast %19 : vector<1x128xf32> to vector<8x128xf32>
    %21 = arith.addf %18, %20 : vector<8x128xf32>
    %c0_17 = arith.constant 0 : index
    %c0_18 = arith.constant 0 : index
    %22 = vector.load %arg8[%c0_17, %c0_18] : memref<8x128xf32, #tpu.memory_space<vmem>>, vector<8x128xf32>
    tpu.vector_store %arg8[%c0_17, %c0_18], %21 {strides = array<i32>} : memref<8x128xf32, #tpu.memory_space<vmem>>, vector<8x128xf32>,
    return
  }
  func.func @transform_0(%arg0: i32) -> (i32, i32) {
    %c0_i32 = arith.constant 0 : i32
    %c0_i32_0 = arith.constant 0 : i32
    return %arg0, %c0_i32 : i32, i32
  }
  func.func @transform_1(%arg0: i32) -> (i32, i32) {
    %c0_i32 = arith.constant 0 : i32
    %c0_i32_0 = arith.constant 0 : i32
    %c0_i32_1 = arith.constant 0 : i32
    return %c0_i32, %c0_i32_0 : i32, i32
  }
  func.func @transform_2(%arg0: i32) -> (i32, i32) {
    %c0_i32 = arith.constant 0 : i32
    %c0_i32_0 = arith.constant 0 : i32
    %c0_i32_1 = arith.constant 0 : i32
    return %c0_i32, %c0_i32_0 : i32, i32
  }
  func.func @transform_3(%arg0: i32) -> (i32, i32) {
    %c0_i32 = arith.constant 0 : i32
    %c0_i32_0 = arith.constant 0 : i32
    %c0_i32_1 = arith.constant 0 : i32
    return %c0_i32, %c0_i32_0 : i32, i32
  }
  func.func @transform_4(%arg0: i32) -> (i32, i32) {
    %c0_i32 = arith.constant 0 : i32
    %c0_i32_0 = arith.constant 0 : i32
    %c0_i32_1 = arith.constant 0 : i32
    return %c0_i32, %c0_i32_0 : i32, i32
  }
  func.func @transform_5(%arg0: i32) -> (i32, i32) {
    %c0_i32 = arith.constant 0 : i32
    %c0_i32_0 = arith.constant 0 : i32
    %c0_i32_1 = arith.constant 0 : i32
    return %c0_i32, %c0_i32_0 : i32, i32
  }
  func.func @transform_6(%arg0: i32) -> (i32, i32) {
    %c0_i32 = arith.constant 0 : i32
    %c0_i32_0 = arith.constant 0 : i32
    %c0_i32_1 = arith.constant 0 : i32
    return %c0_i32, %c0_i32_0 : i32, i32
  }
  func.func @transform_7(%arg0: i32) -> (i32, i32) {
    %c0_i32 = arith.constant 0 : i32
    %c0_i32_0 = arith.constant 0 : i32
    return %arg0, %c0_i32 : i32, i32
  }
}

</mosaic_0001>

<llo_original>
// kernel: dqn_forward.1
$region0: #{dqn_forward.1}
  #allocation0 [shape = 'u32[]', space=smem, size = 0x4, offset = 0x4, fixed_abs, tag = 'smem constant byte address 0x4 - core index']
  #allocation1 [shape = 'u32[144,128]{1,0:T(1,128)}', space=vmem, size = 0x12000, scoped, tag = 'internal scratch']
  %s0 = inlined_call_operand.vmem [shape: bf16[8,512], index: 0, kind: input, shape index: {}]
  %s1 = inlined_call_operand.vmem [shape: bf16[512,512], index: 1, kind: input, shape index: {}]
  %s2 = inlined_call_operand.vmem [shape: f32[1,512], index: 2, kind: input, shape index: {}]
  %s3 = inlined_call_operand.vmem [shape: bf16[512,128], index: 3, kind: input, shape index: {}]
  %s4 = inlined_call_operand.vmem [shape: f32[1,128], index: 4, kind: input, shape index: {}]
  %s5 = inlined_call_operand.vmem [shape: bf16[128,128], index: 5, kind: input, shape index: {}]
  %s6 = inlined_call_operand.vmem [shape: f32[1,128], index: 6, kind: input, shape index: {}]
  %s7 = inlined_call_operand.hbm [shape: f32[8,128], index: 7, kind: output, shape index: {}]
  %s8 = sld [smem:[#allocation0]]
  $region38: #{dqn_forward.1} parent=0
    _
  %s10 = ssub.s32 1, %s8
  %s11 = scalar_select 0, %s10, %s8
  $region1: #{dqn_forward.1} parent=0
    #allocation2 [shape = 'u8[4096]{0}', space=vmem, size = 0x1000, scoped, tag = 'output window, operand 0, single buffered']
    #allocation3 [shape = 's32[1]{0}', space=sflag, size = 0x4, scoped, tag = 'scoped memory for dqn_forward.1']
    %12 = vsyncpa [#allocation3], 0
    // Predicated region
    $region2: #{dqn_forward.1} parent=1 // pred_check
      _
    $region3: #{dqn_forward.1} parent=1 // pred_check_branch
      %14 = sbr.rel (0) target = $region5
    $region4: #{dqn_forward.1} parent=1 // pred_region
      _
    $region5: #{dqn_forward.1} parent=1 // pred_fallthru
      _
    // Predicated region
    $region6: #{dqn_forward.1} parent=1 // pred_check
      _
    $region7: #{dqn_forward.1} parent=1 // pred_check_branch
      %16 = sbr.rel (0) target = $region9
    $region8: #{dqn_forward.1} parent=1 // pred_region
      _
    $region9: #{dqn_forward.1} parent=1 // pred_fallthru
      _
    // Predicated region
    $region10: #{dqn_forward.1} parent=1 // pred_check
      _
    $region11: #{dqn_forward.1} parent=1 // pred_check_branch
      %18 = sbr.rel (0) target = $region13
    $region12: #{dqn_forward.1} parent=1 // pred_region
      _
    $region13: #{dqn_forward.1} parent=1 // pred_fallthru
      _
    // Predicated region
    $region14: #{dqn_forward.1} parent=1 // pred_check
      _
    $region15: #{dqn_forward.1} parent=1 // pred_check_branch
      %20 = sbr.rel (0) target = $region17
    $region16: #{dqn_forward.1} parent=1 // pred_region
      _
    $region17: #{dqn_forward.1} parent=1 // pred_fallthru
      _
    // Predicated region
    $region18: #{dqn_forward.1} parent=1 // pred_check
      _
    $region19: #{dqn_forward.1} parent=1 // pred_check_branch
      %22 = sbr.rel (0) target = $region21
    $region20: #{dqn_forward.1} parent=1 // pred_region
      _
    $region21: #{dqn_forward.1} parent=1 // pred_fallthru
      _
    // Predicated region
    $region22: #{dqn_forward.1} parent=1 // pred_check
      _
    $region23: #{dqn_forward.1} parent=1 // pred_check_branch
      %24 = sbr.rel (0) target = $region25
    $region24: #{dqn_forward.1} parent=1 // pred_region
      _
    $region25: #{dqn_forward.1} parent=1 // pred_fallthru
      _
    // Predicated region
    $region26: #{dqn_forward.1} parent=1 // pred_check
      _
    $region27: #{dqn_forward.1} parent=1 // pred_check_branch
      %26 = sbr.rel (0) target = $region29
    $region28: #{dqn_forward.1} parent=1 // pred_region
      _
    $region29: #{dqn_forward.1} parent=1 // pred_fallthru
      _
    %v28 = vld [vmem:[%s0] sm:$0xff]
    %v29 = vld [vmem:[%s0 + $0x8] sm:$0xff]
    %v30 = vld [vmem:[%s1] sm:$0xff]
    %v31 = vld [vmem:[%s1 + $0x8] sm:$0xff]
    %v32 = vld [vmem:[%s1 + $0x10] sm:$0xff]
    %v33 = vld [vmem:[%s1 + $0x18] sm:$0xff]
    %v34 = vld [vmem:[%s1 + $0x20] sm:$0xff]
    %v35 = vld [vmem:[%s1 + $0x28] sm:$0xff]
    %v36 = vld [vmem:[%s1 + $0x30] sm:$0xff]
    %v37 = vld [vmem:[%s1 + $0x38] sm:$0xff]
    %v38 = vld [vmem:[%s1 + $0x40] sm:$0xff]
    %v39 = vld [vmem:[%s1 + $0x48] sm:$0xff]
    %v40 = vld [vmem:[%s1 + $0x50] sm:$0xff]
    %v41 = vld [vmem:[%s1 + $0x58] sm:$0xff]
    %v42 = vld [vmem:[%s1 + $0x60] sm:$0xff]
    %v43 = vld [vmem:[%s1 + $0x68] sm:$0xff]
    %v44 = vld [vmem:[%s1 + $0x70] sm:$0xff]
    %v45 = vld [vmem:[%s1 + $0x78] sm:$0xff]
    %v46 = vld [vmem:[%s1 + $0x80] sm:$0xff]
    %v47 = vld [vmem:[%s1 + $0x88] sm:$0xff]
    %v48 = vld [vmem:[%s1 + $0x90] sm:$0xff]
    %v49 = vld [vmem:[%s1 + $0x98] sm:$0xff]
    %v50 = vld [vmem:[%s1 + $0xa0] sm:$0xff]
    %v51 = vld [vmem:[%s1 + $0xa8] sm:$0xff]
    %v52 = vld [vmem:[%s1 + $0xb0] sm:$0xff]
    %v53 = vld [vmem:[%s1 + $0xb8] sm:$0xff]
    %v54 = vld [vmem:[%s1 + $0xc0] sm:$0xff]
    %v55 = vld [vmem:[%s1 + $0xc8] sm:$0xff]
    %v56 = vld [vmem:[%s1 + $0xd0] sm:$0xff]
    %v57 = vld [vmem:[%s1 + $0xd8] sm:$0xff]
    %v58 = vld [vmem:[%s1 + $0xe0] sm:$0xff]
    %v59 = vld [vmem:[%s1 + $0xe8] sm:$0xff]
    %v60 = vld [vmem:[%s1 + $0xf0] sm:$0xff]
    %v61 = vld [vmem:[%s1 + $0xf8] sm:$0xff]
    %v62 = vld [vmem:[%s1 + $0x100] sm:$0xff]
    %v63 = vld [vmem:[%s1 + $0x108] sm:$0xff]
    %v64 = vld [vmem:[%s1 + $0x110] sm:$0xff]
    %v65 = vld [vmem:[%s1 + $0x118] sm:$0xff]
    %v66 = vld [vmem:[%s1 + $0x120] sm:$0xff]
    %v67 = vld [vmem:[%s1 + $0x128] sm:$0xff]
    %v68 = vld [vmem:[%s1 + $0x130] sm:$0xff]
    %v69 = vld [vmem:[%s1 + $0x138] sm:$0xff]
    %v70 = vld [vmem:[%s1 + $0x140] sm:$0xff]
    %v71 = vld [vmem:[%s1 + $0x148] sm:$0xff]
    %v72 = vld [vmem:[%s1 + $0x150] sm:$0xff]
    %v73 = vld [vmem:[%s1 + $0x158] sm:$0xff]
    %v74 = vld [vmem:[%s1 + $0x160] sm:$0xff]
    %v75 = vld [vmem:[%s1 + $0x168] sm:$0xff]
    %v76 = vld [vmem:[%s1 + $0x170] sm:$0xff]
    %v77 = vld [vmem:[%s1 + $0x178] sm:$0xff]
    %v78 = vld [vmem:[%s1 + $0x180] sm:$0xff]
    %v79 = vld [vmem:[%s1 + $0x188] sm:$0xff]
    %v80 = vld [vmem:[%s1 + $0x190] sm:$0xff]
    %v81 = vld [vmem:[%s1 + $0x198] sm:$0xff]
    %v82 = vld [vmem:[%s1 + $0x1a0] sm:$0xff]
    %v83 = vld [vmem:[%s1 + $0x1a8] sm:$0xff]
    %v84 = vld [vmem:[%s1 + $0x1b0] sm:$0xff]
    %v85 = vld [vmem:[%s1 + $0x1b8] sm:$0xff]
    %v86 = vld [vmem:[%s1 + $0x1c0] sm:$0xff]
    %v87 = vld [vmem:[%s1 + $0x1c8] sm:$0xff]
    %v88 = vld [vmem:[%s1 + $0x1d0] sm:$0xff]
    %v89 = vld [vmem:[%s1 + $0x1d8] sm:$0xff]
    %v90 = vld [vmem:[%s1 + $0x1e0] sm:$0xff]
    %v91 = vld [vmem:[%s1 + $0x1e8] sm:$0xff]
    %v92 = vld [vmem:[%s1 + $0x1f0] sm:$0xff]
    %v93 = vld [vmem:[%s1 + $0x1f8] sm:$0xff]
    %v94 = vld [vmem:[%s1 + $0x200] sm:$0xff]
    %v95 = vld [vmem:[%s1 + $0x208] sm:$0xff]
    %v96 = vld [vmem:[%s1 + $0x210] sm:$0xff]
    %v97 = vld [vmem:[%s1 + $0x218] sm:$0xff]
    %v98 = vld [vmem:[%s1 + $0x220] sm:$0xff]
    %v99 = vld [vmem:[%s1 + $0x228] sm:$0xff]
    %v100 = vld [vmem:[%s1 + $0x230] sm:$0xff]
    %v101 = vld [vmem:[%s1 + $0x238] sm:$0xff]
    %v102 = vld [vmem:[%s1 + $0x240] sm:$0xff]
    %v103 = vld [vmem:[%s1 + $0x248] sm:$0xff]
    %v104 = vld [vmem:[%s1 + $0x250] sm:$0xff]
    %v105 = vld [vmem:[%s1 + $0x258] sm:$0xff]
    %v106 = vld [vmem:[%s1 + $0x260] sm:$0xff]
    %v107 = vld [vmem:[%s1 + $0x268] sm:$0xff]
    %v108 = vld [vmem:[%s1 + $0x270] sm:$0xff]
    %v109 = vld [vmem:[%s1 + $0x278] sm:$0xff]
    %v110 = vld [vmem:[%s1 + $0x280] sm:$0xff]
    %v111 = vld [vmem:[%s1 + $0x288] sm:$0xff]
    %v112 = vld [vmem:[%s1 + $0x290] sm:$0xff]
    %v113 = vld [vmem:[%s1 + $0x298] sm:$0xff]
    %v114 = vld [vmem:[%s1 + $0x2a0] sm:$0xff]
    %v115 = vld [vmem:[%s1 + $0x2a8] sm:$0xff]
    %v116 = vld [vmem:[%s1 + $0x2b0] sm:$0xff]
    %v117 = vld [vmem:[%s1 + $0x2b8] sm:$0xff]
    %v118 = vld [vmem:[%s1 + $0x2c0] sm:$0xff]
    %v119 = vld [vmem:[%s1 + $0x2c8] sm:$0xff]
    %v120 = vld [vmem:[%s1 + $0x2d0] sm:$0xff]
    %v121 = vld [vmem:[%s1 + $0x2d8] sm:$0xff]
    %v122 = vld [vmem:[%s1 + $0x2e0] sm:$0xff]
    %v123 = vld [vmem:[%s1 + $0x2e8] sm:$0xff]
    %v124 = vld [vmem:[%s1 + $0x2f0] sm:$0xff]
    %v125 = vld [vmem:[%s1 + $0x2f8] sm:$0xff]
    %v126 = vld [vmem:[%s1 + $0x300] sm:$0xff]
    %v127 = vld [vmem:[%s1 + $0x308] sm:$0xff]
    %v128 = vld [vmem:[%s1 + $0x310] sm:$0xff]
    %v129 = vld [vmem:[%s1 + $0x318] sm:$0xff]
    %v130 = vld [vmem:[%s1 + $0x320] sm:$0xff]
    %v131 = vld [vmem:[%s1 + $0x328] sm:$0xff]
    %v132 = vld [vmem:[%s1 + $0x330] sm:$0xff]
    %v133 = vld [vmem:[%s1 + $0x338] sm:$0xff]
    %v134 = vld [vmem:[%s1 + $0x340] sm:$0xff]
    %v135 = vld [vmem:[%s1 + $0x348] sm:$0xff]
    %v136 = vld [vmem:[%s1 + $0x350] sm:$0xff]
    %v137 = vld [vmem:[%s1 + $0x358] sm:$0xff]
    %v138 = vld [vmem:[%s1 + $0x360] sm:$0xff]
    %v139 = vld [vmem:[%s1 + $0x368] sm:$0xff]
    %v140 = vld [vmem:[%s1 + $0x370] sm:$0xff]
    %v141 = vld [vmem:[%s1 + $0x378] sm:$0xff]
    %v142 = vld [vmem:[%s1 + $0x380] sm:$0xff]
    %v143 = vld [vmem:[%s1 + $0x388] sm:$0xff]
    %v144 = vld [vmem:[%s1 + $0x390] sm:$0xff]
    %v145 = vld [vmem:[%s1 + $0x398] sm:$0xff]
    %v146 = vld [vmem:[%s1 + $0x3a0] sm:$0xff]
    %v147 = vld [vmem:[%s1 + $0x3a8] sm:$0xff]
    %v148 = vld [vmem:[%s1 + $0x3b0] sm:$0xff]
    %v149 = vld [vmem:[%s1 + $0x3b8] sm:$0xff]
    %v150 = vld [vmem:[%s1 + $0x3c0] sm:$0xff]
    %v151 = vld [vmem:[%s1 + $0x3c8] sm:$0xff]
    %v152 = vld [vmem:[%s1 + $0x3d0] sm:$0xff]
    %v153 = vld [vmem:[%s1 + $0x3d8] sm:$0xff]
    %v154 = vld [vmem:[%s1 + $0x3e0] sm:$0xff]
    %v155 = vld [vmem:[%s1 + $0x3e8] sm:$0xff]
    %v156 = vld [vmem:[%s1 + $0x3f0] sm:$0xff]
    %v157 = vld [vmem:[%s1 + $0x3f8] sm:$0xff]
    %v158 = vld [vmem:[%s2] sm:$0xf]
    %v160 = vlaneseq
    %v161 = vshrl.u32 %v160, 7
    %v162 = vsub.s32 0, %v161
    %v163 = vrot.slane %v158, %v162
    %v164 = vlaneseq
    %v165 = vshrl.u32 %v164, 7
    %v166 = vsub.s32 1, %v165
    %v167 = vrot.slane %v158, %v166
    %v168 = vlaneseq
    %v169 = vshrl.u32 %v168, 7
    %v170 = vsub.s32 2, %v169
    %v171 = vrot.slane %v158, %v170
    %v172 = vlaneseq
    %v173 = vshrl.u32 %v172, 7
    %v174 = vsub.s32 3, %v173
    %v175 = vrot.slane %v158, %v174
    %v182 = vunpack.c.l.b16 %v28
    %v183 = vunpack.c.h.b16 %v28
    %v184 = vunpack.c.l.b16 %v29
    %v185 = vunpack.c.h.b16 %v29
    %v186 = vpack.c.b16 %v182, %v182
    %v187 = vpack.c.b16 %v183, %v183
    %v188 = vpack.c.b16 %v184, %v184
    %v189 = vpack.c.b16 %v185, %v185
    %v322 = vunpack.c.l.b16 %v30
    %v323 = vunpack.c.h.b16 %v30
    %v324 = vunpack.c.l.b16 %v31
    %v325 = vunpack.c.h.b16 %v31
    %v326 = vunpack.c.l.b16 %v32
    %v327 = vunpack.c.h.b16 %v32
    %v328 = vunpack.c.l.b16 %v33
    %v329 = vunpack.c.h.b16 %v33
    %v330 = vunpack.c.l.b16 %v34
    %v331 = vunpack.c.h.b16 %v34
    %v332 = vunpack.c.l.b16 %v35
    %v333 = vunpack.c.h.b16 %v35
    %v334 = vunpack.c.l.b16 %v36
    %v335 = vunpack.c.h.b16 %v36
    %v336 = vunpack.c.l.b16 %v37
    %v337 = vunpack.c.h.b16 %v37
    %v338 = vunpack.c.l.b16 %v38
    %v339 = vunpack.c.h.b16 %v38
    %v340 = vunpack.c.l.b16 %v39
    %v341 = vunpack.c.h.b16 %v39
    %v342 = vunpack.c.l.b16 %v40
    %v343 = vunpack.c.h.b16 %v40
    %v344 = vunpack.c.l.b16 %v41
    %v345 = vunpack.c.h.b16 %v41
    %v346 = vunpack.c.l.b16 %v42
    %v347 = vunpack.c.h.b16 %v42
    %v348 = vunpack.c.l.b16 %v43
    %v349 = vunpack.c.h.b16 %v43
    %v350 = vunpack.c.l.b16 %v44
    %v351 = vunpack.c.h.b16 %v44
    %v352 = vunpack.c.l.b16 %v45
    %v353 = vunpack.c.h.b16 %v45
    %v354 = vunpack.c.l.b16 %v46
    %v355 = vunpack.c.h.b16 %v46
    %v356 = vunpack.c.l.b16 %v47
    %v357 = vunpack.c.h.b16 %v47
    %v358 = vunpack.c.l.b16 %v48
    %v359 = vunpack.c.h.b16 %v48
    %v360 = vunpack.c.l.b16 %v49
    %v361 = vunpack.c.h.b16 %v49
    %v362 = vunpack.c.l.b16 %v50
    %v363 = vunpack.c.h.b16 %v50
    %v364 = vunpack.c.l.b16 %v51
    %v365 = vunpack.c.h.b16 %v51
    %v366 = vunpack.c.l.b16 %v52
    %v367 = vunpack.c.h.b16 %v52
    %v368 = vunpack.c.l.b16 %v53
    %v369 = vunpack.c.h.b16 %v53
    %v370 = vunpack.c.l.b16 %v54
    %v371 = vunpack.c.h.b16 %v54
    %v372 = vunpack.c.l.b16 %v55
    %v373 = vunpack.c.h.b16 %v55
    %v374 = vunpack.c.l.b16 %v56
    %v375 = vunpack.c.h.b16 %v56
    %v376 = vunpack.c.l.b16 %v57
    %v377 = vunpack.c.h.b16 %v57
    %v378 = vunpack.c.l.b16 %v58
    %v379 = vunpack.c.h.b16 %v58
    %v380 = vunpack.c.l.b16 %v59
    %v381 = vunpack.c.h.b16 %v59
    %v382 = vunpack.c.l.b16 %v60
    %v383 = vunpack.c.h.b16 %v60
    %v384 = vunpack.c.l.b16 %v61
    %v385 = vunpack.c.h.b16 %v61
    %v386 = vunpack.c.l.b16 %v62
    %v387 = vunpack.c.h.b16 %v62
    %v388 = vunpack.c.l.b16 %v63
    %v389 = vunpack.c.h.b16 %v63
    %v390 = vunpack.c.l.b16 %v64
    %v391 = vunpack.c.h.b16 %v64
    %v392 = vunpack.c.l.b16 %v65
    %v393 = vunpack.c.h.b16 %v65
    %v394 = vunpack.c.l.b16 %v66
    %v395 = vunpack.c.h.b16 %v66
    %v396 = vunpack.c.l.b16 %v67
    %v397 = vunpack.c.h.b16 %v67
    %v398 = vunpack.c.l.b16 %v68
    %v399 = vunpack.c.h.b16 %v68
    %v400 = vunpack.c.l.b16 %v69
    %v401 = vunpack.c.h.b16 %v69
    %v402 = vunpack.c.l.b16 %v70
    %v403 = vunpack.c.h.b16 %v70
    %v404 = vunpack.c.l.b16 %v71
    %v405 = vunpack.c.h.b16 %v71
    %v406 = vunpack.c.l.b16 %v72
    %v407 = vunpack.c.h.b16 %v72
    %v408 = vunpack.c.l.b16 %v73
    %v409 = vunpack.c.h.b16 %v73
    %v410 = vunpack.c.l.b16 %v74
    %v411 = vunpack.c.h.b16 %v74
    %v412 = vunpack.c.l.b16 %v75
    %v413 = vunpack.c.h.b16 %v75
    %v414 = vunpack.c.l.b16 %v76
    %v415 = vunpack.c.h.b16 %v76
    %v416 = vunpack.c.l.b16 %v77
    %v417 = vunpack.c.h.b16 %v77
    %v418 = vunpack.c.l.b16 %v78
    %v419 = vunpack.c.h.b16 %v78
    %v420 = vunpack.c.l.b16 %v79
    %v421 = vunpack.c.h.b16 %v79
    %v422 = vunpack.c.l.b16 %v80
    %v423 = vunpack.c.h.b16 %v80
    %v424 = vunpack.c.l.b16 %v81
    %v425 = vunpack.c.h.b16 %v81
    %v426 = vunpack.c.l.b16 %v82
    %v427 = vunpack.c.h.b16 %v82
    %v428 = vunpack.c.l.b16 %v83
    %v429 = vunpack.c.h.b16 %v83
    %v430 = vunpack.c.l.b16 %v84
    %v431 = vunpack.c.h.b16 %v84
    %v432 = vunpack.c.l.b16 %v85
    %v433 = vunpack.c.h.b16 %v85
    %v434 = vunpack.c.l.b16 %v86
    %v435 = vunpack.c.h.b16 %v86
    %v436 = vunpack.c.l.b16 %v87
    %v437 = vunpack.c.h.b16 %v87
    %v438 = vunpack.c.l.b16 %v88
    %v439 = vunpack.c.h.b16 %v88
    %v440 = vunpack.c.l.b16 %v89
    %v441 = vunpack.c.h.b16 %v89
    %v442 = vunpack.c.l.b16 %v90
    %v443 = vunpack.c.h.b16 %v90
    %v444 = vunpack.c.l.b16 %v91
    %v445 = vunpack.c.h.b16 %v91
    %v446 = vunpack.c.l.b16 %v92
    %v447 = vunpack.c.h.b16 %v92
    %v448 = vunpack.c.l.b16 %v93
    %v449 = vunpack.c.h.b16 %v93
    %v450 = vunpack.c.l.b16 %v94
    %v451 = vunpack.c.h.b16 %v94
    %v452 = vunpack.c.l.b16 %v95
    %v453 = vunpack.c.h.b16 %v95
    %v454 = vunpack.c.l.b16 %v96
    %v455 = vunpack.c.h.b16 %v96
    %v456 = vunpack.c.l.b16 %v97
    %v457 = vunpack.c.h.b16 %v97
    %v458 = vunpack.c.l.b16 %v98
    %v459 = vunpack.c.h.b16 %v98
    %v460 = vunpack.c.l.b16 %v99
    %v461 = vunpack.c.h.b16 %v99
    %v462 = vunpack.c.l.b16 %v100
    %v463 = vunpack.c.h.b16 %v100
    %v464 = vunpack.c.l.b16 %v101
    %v465 = vunpack.c.h.b16 %v101
    %v466 = vunpack.c.l.b16 %v102
    %v467 = vunpack.c.h.b16 %v102
    %v468 = vunpack.c.l.b16 %v103
    %v469 = vunpack.c.h.b16 %v103
    %v470 = vunpack.c.l.b16 %v104
    %v471 = vunpack.c.h.b16 %v104
    %v472 = vunpack.c.l.b16 %v105
    %v473 = vunpack.c.h.b16 %v105
    %v474 = vunpack.c.l.b16 %v106
    %v475 = vunpack.c.h.b16 %v106
    %v476 = vunpack.c.l.b16 %v107
    %v477 = vunpack.c.h.b16 %v107
    %v478 = vunpack.c.l.b16 %v108
    %v479 = vunpack.c.h.b16 %v108
    %v480 = vunpack.c.l.b16 %v109
    %v481 = vunpack.c.h.b16 %v109
    %v482 = vunpack.c.l.b16 %v110
    %v483 = vunpack.c.h.b16 %v110
    %v484 = vunpack.c.l.b16 %v111
    %v485 = vunpack.c.h.b16 %v111
    %v486 = vunpack.c.l.b16 %v112
    %v487 = vunpack.c.h.b16 %v112
    %v488 = vunpack.c.l.b16 %v113
    %v489 = vunpack.c.h.b16 %v113
    %v490 = vunpack.c.l.b16 %v114
    %v491 = vunpack.c.h.b16 %v114
    %v492 = vunpack.c.l.b16 %v115
    %v493 = vunpack.c.h.b16 %v115
    %v494 = vunpack.c.l.b16 %v116
    %v495 = vunpack.c.h.b16 %v116
    %v496 = vunpack.c.l.b16 %v117
    %v497 = vunpack.c.h.b16 %v117
    %v498 = vunpack.c.l.b16 %v118
    %v499 = vunpack.c.h.b16 %v118
    %v500 = vunpack.c.l.b16 %v119
    %v501 = vunpack.c.h.b16 %v119
    %v502 = vunpack.c.l.b16 %v120
    %v503 = vunpack.c.h.b16 %v120
    %v504 = vunpack.c.l.b16 %v121
    %v505 = vunpack.c.h.b16 %v121
    %v506 = vunpack.c.l.b16 %v122
    %v507 = vunpack.c.h.b16 %v122
    %v508 = vunpack.c.l.b16 %v123
    %v509 = vunpack.c.h.b16 %v123
    %v510 = vunpack.c.l.b16 %v124
    %v511 = vunpack.c.h.b16 %v124
    %v512 = vunpack.c.l.b16 %v125
    %v513 = vunpack.c.h.b16 %v125
    %v514 = vunpack.c.l.b16 %v126
    %v515 = vunpack.c.h.b16 %v126
    %v516 = vunpack.c.l.b16 %v127
    %v517 = vunpack.c.h.b16 %v127
    %v518 = vunpack.c.l.b16 %v128
    %v519 = vunpack.c.h.b16 %v128
    %v520 = vunpack.c.l.b16 %v129
    %v521 = vunpack.c.h.b16 %v129
    %v522 = vunpack.c.l.b16 %v130
    %v523 = vunpack.c.h.b16 %v130
    %v524 = vunpack.c.l.b16 %v131
    %v525 = vunpack.c.h.b16 %v131
    %v526 = vunpack.c.l.b16 %v132
    %v527 = vunpack.c.h.b16 %v132
    %v528 = vunpack.c.l.b16 %v133
    %v529 = vunpack.c.h.b16 %v133
    %v530 = vunpack.c.l.b16 %v134
    %v531 = vunpack.c.h.b16 %v134
    %v532 = vunpack.c.l.b16 %v135
    %v533 = vunpack.c.h.b16 %v135
    %v534 = vunpack.c.l.b16 %v136
    %v535 = vunpack.c.h.b16 %v136
    %v536 = vunpack.c.l.b16 %v137
    %v537 = vunpack.c.h.b16 %v137
    %v538 = vunpack.c.l.b16 %v138
    %v539 = vunpack.c.h.b16 %v138
    %v540 = vunpack.c.l.b16 %v139
    %v541 = vunpack.c.h.b16 %v139
    %v542 = vunpack.c.l.b16 %v140
    %v543 = vunpack.c.h.b16 %v140
    %v544 = vunpack.c.l.b16 %v141
    %v545 = vunpack.c.h.b16 %v141
    %v546 = vunpack.c.l.b16 %v142
    %v547 = vunpack.c.h.b16 %v142
    %v548 = vunpack.c.l.b16 %v143
    %v549 = vunpack.c.h.b16 %v143
    %v550 = vunpack.c.l.b16 %v144
    %v551 = vunpack.c.h.b16 %v144
    %v552 = vunpack.c.l.b16 %v145
    %v553 = vunpack.c.h.b16 %v145
    %v554 = vunpack.c.l.b16 %v146
    %v555 = vunpack.c.h.b16 %v146
    %v556 = vunpack.c.l.b16 %v147
    %v557 = vunpack.c.h.b16 %v147
    %v558 = vunpack.c.l.b16 %v148
    %v559 = vunpack.c.h.b16 %v148
    %v560 = vunpack.c.l.b16 %v149
    %v561 = vunpack.c.h.b16 %v149
    %v562 = vunpack.c.l.b16 %v150
    %v563 = vunpack.c.h.b16 %v150
    %v564 = vunpack.c.l.b16 %v151
    %v565 = vunpack.c.h.b16 %v151
    %v566 = vunpack.c.l.b16 %v152
    %v567 = vunpack.c.h.b16 %v152
    %v568 = vunpack.c.l.b16 %v153
    %v569 = vunpack.c.h.b16 %v153
    %v570 = vunpack.c.l.b16 %v154
    %v571 = vunpack.c.h.b16 %v154
    %v572 = vunpack.c.l.b16 %v155
    %v573 = vunpack.c.h.b16 %v155
    %v574 = vunpack.c.l.b16 %v156
    %v575 = vunpack.c.h.b16 %v156
    %v576 = vunpack.c.l.b16 %v157
    %v577 = vunpack.c.h.b16 %v157
    %v578 = vpack.c.b16 %v326, %v322
    %v579 = vpack.c.b16 %v327, %v323
    %v580 = vpack.c.b16 %v328, %v324
    %v581 = vpack.c.b16 %v329, %v325
    %v582 = vpack.c.b16 %v334, %v330
    %v583 = vpack.c.b16 %v335, %v331
    %v584 = vpack.c.b16 %v336, %v332
    %v585 = vpack.c.b16 %v337, %v333
    %v586 = vpack.c.b16 %v342, %v338
    %v587 = vpack.c.b16 %v343, %v339
    %v588 = vpack.c.b16 %v344, %v340
    %v589 = vpack.c.b16 %v345, %v341
    %v590 = vpack.c.b16 %v350, %v346
    %v591 = vpack.c.b16 %v351, %v347
    %v592 = vpack.c.b16 %v352, %v348
    %v593 = vpack.c.b16 %v353, %v349
    %v594 = vpack.c.b16 %v358, %v354
    %v595 = vpack.c.b16 %v359, %v355
    %v596 = vpack.c.b16 %v360, %v356
    %v597 = vpack.c.b16 %v361, %v357
    %v598 = vpack.c.b16 %v366, %v362
    %v599 = vpack.c.b16 %v367, %v363
    %v600 = vpack.c.b16 %v368, %v364
    %v601 = vpack.c.b16 %v369, %v365
    %v602 = vpack.c.b16 %v374, %v370
    %v603 = vpack.c.b16 %v375, %v371
    %v604 = vpack.c.b16 %v376, %v372
    %v605 = vpack.c.b16 %v377, %v373
    %v606 = vpack.c.b16 %v382, %v378
    %v607 = vpack.c.b16 %v383, %v379
    %v608 = vpack.c.b16 %v384, %v380
    %v609 = vpack.c.b16 %v385, %v381
    %v610 = vpack.c.b16 %v390, %v386
    %v611 = vpack.c.b16 %v391, %v387
    %v612 = vpack.c.b16 %v392, %v388
    %v613 = vpack.c.b16 %v393, %v389
    %v614 = vpack.c.b16 %v398, %v394
    %v615 = vpack.c.b16 %v399, %v395
    %v616 = vpack.c.b16 %v400, %v396
    %v617 = vpack.c.b16 %v401, %v397
    %v618 = vpack.c.b16 %v406, %v402
    %v619 = vpack.c.b16 %v407, %v403
    %v620 = vpack.c.b16 %v408, %v404
    %v621 = vpack.c.b16 %v409, %v405
    %v622 = vpack.c.b16 %v414, %v410
    %v623 = vpack.c.b16 %v415, %v411
    %v624 = vpack.c.b16 %v416, %v412
    %v625 = vpack.c.b16 %v417, %v413
    %v626 = vpack.c.b16 %v422, %v418
    %v627 = vpack.c.b16 %v423, %v419
    %v628 = vpack.c.b16 %v424, %v420
    %v629 = vpack.c.b16 %v425, %v421
    %v630 = vpack.c.b16 %v430, %v426
    %v631 = vpack.c.b16 %v431, %v427
    %v632 = vpack.c.b16 %v432, %v428
    %v633 = vpack.c.b16 %v433, %v429
    %v634 = vpack.c.b16 %v438, %v434
    %v635 = vpack.c.b16 %v439, %v435
    %v636 = vpack.c.b16 %v440, %v436
    %v637 = vpack.c.b16 %v441, %v437
    %v638 = vpack.c.b16 %v446, %v442
    %v639 = vpack.c.b16 %v447, %v443
    %v640 = vpack.c.b16 %v448, %v444
    %v641 = vpack.c.b16 %v449, %v445
    %v642 = vpack.c.b16 %v454, %v450
    %v643 = vpack.c.b16 %v455, %v451
    %v644 = vpack.c.b16 %v456, %v452
    %v645 = vpack.c.b16 %v457, %v453
    %v646 = vpack.c.b16 %v462, %v458
    %v647 = vpack.c.b16 %v463, %v459
    %v648 = vpack.c.b16 %v464, %v460
    %v649 = vpack.c.b16 %v465, %v461
    %v650 = vpack.c.b16 %v470, %v466
    %v651 = vpack.c.b16 %v471, %v467
    %v652 = vpack.c.b16 %v472, %v468
    %v653 = vpack.c.b16 %v473, %v469
    %v654 = vpack.c.b16 %v478, %v474
    %v655 = vpack.c.b16 %v479, %v475
    %v656 = vpack.c.b16 %v480, %v476
    %v657 = vpack.c.b16 %v481, %v477
    %v658 = vpack.c.b16 %v486, %v482
    %v659 = vpack.c.b16 %v487, %v483
    %v660 = vpack.c.b16 %v488, %v484
    %v661 = vpack.c.b16 %v489, %v485
    %v662 = vpack.c.b16 %v494, %v490
    %v663 = vpack.c.b16 %v495, %v491
    %v664 = vpack.c.b16 %v496, %v492
    %v665 = vpack.c.b16 %v497, %v493
    %v666 = vpack.c.b16 %v502, %v498
    %v667 = vpack.c.b16 %v503, %v499
    %v668 = vpack.c.b16 %v504, %v500
    %v669 = vpack.c.b16 %v505, %v501
    %v670 = vpack.c.b16 %v510, %v506
    %v671 = vpack.c.b16 %v511, %v507
    %v672 = vpack.c.b16 %v512, %v508
    %v673 = vpack.c.b16 %v513, %v509
    %v674 = vpack.c.b16 %v518, %v514
    %v675 = vpack.c.b16 %v519, %v515
    %v676 = vpack.c.b16 %v520, %v516
    %v677 = vpack.c.b16 %v521, %v517
    %v678 = vpack.c.b16 %v526, %v522
    %v679 = vpack.c.b16 %v527, %v523
    %v680 = vpack.c.b16 %v528, %v524
    %v681 = vpack.c.b16 %v529, %v525
    %v682 = vpack.c.b16 %v534, %v530
    %v683 = vpack.c.b16 %v535, %v531
    %v684 = vpack.c.b16 %v536, %v532
    %v685 = vpack.c.b16 %v537, %v533
    %v686 = vpack.c.b16 %v542, %v538
    %v687 = vpack.c.b16 %v543, %v539
    %v688 = vpack.c.b16 %v544, %v540
    %v689 = vpack.c.b16 %v545, %v541
    %v690 = vpack.c.b16 %v550, %v546
    %v691 = vpack.c.b16 %v551, %v547
    %v692 = vpack.c.b16 %v552, %v548
    %v693 = vpack.c.b16 %v553, %v549
    %v694 = vpack.c.b16 %v558, %v554
    %v695 = vpack.c.b16 %v559, %v555
    %v696 = vpack.c.b16 %v560, %v556
    %v697 = vpack.c.b16 %v561, %v557
    %v698 = vpack.c.b16 %v566, %v562
    %v699 = vpack.c.b16 %v567, %v563
    %v700 = vpack.c.b16 %v568, %v564
    %v701 = vpack.c.b16 %v569, %v565
    %v702 = vpack.c.b16 %v574, %v570
    %v703 = vpack.c.b16 %v575, %v571
    %v704 = vpack.c.b16 %v576, %v572
    %v705 = vpack.c.b16 %v577, %v573
    %834 = vmatprep.subr.bf16.mxu0 %v579
    %835 = vmatpush1.bf16.msra.mxu0 %v578
    %836 = vmatprep.subr.bf16.mxu0 %v583
    %837 = vmatpush1.bf16.msra.mxu0 %v582
    %838 = vmatprep.subr.bf16.mxu0 %v587
    %839 = vmatpush1.bf16.msra.mxu0 %v586
    %840 = vmatprep.subr.bf16.mxu0 %v591
    %841 = vmatpush1.bf16.msra.mxu0 %v590
    %842 = vmatprep.subr.bf16.mxu0 %v595
    %843 = vmatpush1.bf16.msra.mxu0 %v594
    %844 = vmatprep.subr.bf16.mxu0 %v599
    %845 = vmatpush1.bf16.msra.mxu0 %v598
    %846 = vmatprep.subr.bf16.mxu0 %v603
    %847 = vmatpush1.bf16.msra.mxu0 %v602
    %848 = vmatprep.subr.bf16.mxu0 %v607
    %849 = vmatpush1.bf16.msra.mxu0 %v606
    %850 = vmatprep.subr.bf16.mxu0 %v611
    %851 = vmatpush1.bf16.msra.mxu0 %v610
    %852 = vmatprep.subr.bf16.mxu0 %v615
    %853 = vmatpush1.bf16.msra.mxu0 %v614
    %854 = vmatprep.subr.bf16.mxu0 %v619
    %855 = vmatpush1.bf16.msra.mxu0 %v618
    %856 = vmatprep.subr.bf16.mxu0 %v623
    %857 = vmatpush1.bf16.msra.mxu0 %v622
    %858 = vmatprep.subr.bf16.mxu0 %v627
    %859 = vmatpush1.bf16.msra.mxu0 %v626
    %860 = vmatprep.subr.bf16.mxu0 %v631
    %861 = vmatpush1.bf16.msra.mxu0 %v630
    %862 = vmatprep.subr.bf16.mxu0 %v635
    %863 = vmatpush1.bf16.msra.mxu0 %v634
    %864 = vmatprep.subr.bf16.mxu0 %v639
    %865 = vmatpush1.bf16.msra.mxu0 %v638
    %866 = vmatprep.mubr.bf16.mxu0 %v187
    %867 = vmatmul.mubr.bf16.gmra.mrb[0].mxu0 %v186
    %v868 = vpop.f32.mrb[0].mxu0
    %v869 = vadd.f32 %v163, %v868
    %v870 = vpop.f32.mrb[0].mxu0
    %v871 = vadd.f32 %v167, %v870
    %v872 = vpop.f32.mrb[0].mxu0
    %v873 = vpop.f32.mrb[0].mxu0
    %874 = vdwg.mxu0
    %875 = vmatprep.subr.bf16.mxu0 %v643
    %876 = vmatpush1.bf16.msra.mxu0 %v642
    %877 = vmatprep.subr.bf16.mxu0 %v647
    %878 = vmatpush1.bf16.msra.mxu0 %v646
    %879 = vmatprep.subr.bf16.mxu0 %v651
    %880 = vmatpush1.bf16.msra.mxu0 %v650
    %881 = vmatprep.subr.bf16.mxu0 %v655
    %882 = vmatpush1.bf16.msra.mxu0 %v654
    %883 = vmatprep.subr.bf16.mxu0 %v659
    %884 = vmatpush1.bf16.msra.mxu0 %v658
    %885 = vmatprep.subr.bf16.mxu0 %v663
    %886 = vmatpush1.bf16.msra.mxu0 %v662
    %887 = vmatprep.subr.bf16.mxu0 %v667
    %888 = vmatpush1.bf16.msra.mxu0 %v666
    %889 = vmatprep.subr.bf16.mxu0 %v671
    %890 = vmatpush1.bf16.msra.mxu0 %v670
    %891 = vmatprep.subr.bf16.mxu0 %v675
    %892 = vmatpush1.bf16.msra.mxu0 %v674
    %893 = vmatprep.subr.bf16.mxu0 %v679
    %894 = vmatpush1.bf16.msra.mxu0 %v678
    %895 = vmatprep.subr.bf16.mxu0 %v683
    %896 = vmatpush1.bf16.msra.mxu0 %v682
    %897 = vmatprep.subr.bf16.mxu0 %v687
    %898 = vmatpush1.bf16.msra.mxu0 %v686
    %899 = vmatprep.subr.bf16.mxu0 %v691
    %900 = vmatpush1.bf16.msra.mxu0 %v690
    %901 = vmatprep.subr.bf16.mxu0 %v695
    %902 = vmatpush1.bf16.msra.mxu0 %v694
    %903 = vmatprep.subr.bf16.mxu0 %v699
    %904 = vmatpush1.bf16.msra.mxu0 %v698
    %905 = vmatprep.subr.bf16.mxu0 %v703
    %906 = vmatpush1.bf16.msra.mxu0 %v702
    %907 = vmatprep.mubr.bf16.mxu0 %v189
    %908 = vmatmul.mubr.bf16.gmra.mrb[0].mxu0 %v188
    %v909 = vpop.f32.mrb[0].mxu0
    %v910 = vadd.f32 %v869, %v909
    %v911 = vpop.f32.mrb[0].mxu0
    %v912 = vadd.f32 %v871, %v911
    %v913 = vpop.f32.mrb[0].mxu0
    %v914 = vpop.f32.mrb[0].mxu0
    %915 = vdwg.mxu0
    %916 = vmatprep.subr.bf16.mxu0 %v581
    %917 = vmatpush1.bf16.msra.mxu0 %v580
    %918 = vmatprep.subr.bf16.mxu0 %v585
    %919 = vmatpush1.bf16.msra.mxu0 %v584
    %920 = vmatprep.subr.bf16.mxu0 %v589
    %921 = vmatpush1.bf16.msra.mxu0 %v588
    %922 = vmatprep.subr.bf16.mxu0 %v593
    %923 = vmatpush1.bf16.msra.mxu0 %v592
    %924 = vmatprep.subr.bf16.mxu0 %v597
    %925 = vmatpush1.bf16.msra.mxu0 %v596
    %926 = vmatprep.subr.bf16.mxu0 %v601
    %927 = vmatpush1.bf16.msra.mxu0 %v600
    %928 = vmatprep.subr.bf16.mxu0 %v605
    %929 = vmatpush1.bf16.msra.mxu0 %v604
    %930 = vmatprep.subr.bf16.mxu0 %v609
    %931 = vmatpush1.bf16.msra.mxu0 %v608
    %932 = vmatprep.subr.bf16.mxu0 %v613
    %933 = vmatpush1.bf16.msra.mxu0 %v612
    %934 = vmatprep.subr.bf16.mxu0 %v617
    %935 = vmatpush1.bf16.msra.mxu0 %v616
    %936 = vmatprep.subr.bf16.mxu0 %v621
    %937 = vmatpush1.bf16.msra.mxu0 %v620
    %938 = vmatprep.subr.bf16.mxu0 %v625
    %939 = vmatpush1.bf16.msra.mxu0 %v624
    %940 = vmatprep.subr.bf16.mxu0 %v629
    %941 = vmatpush1.bf16.msra.mxu0 %v628
    %942 = vmatprep.subr.bf16.mxu0 %v633
    %943 = vmatpush1.bf16.msra.mxu0 %v632
    %944 = vmatprep.subr.bf16.mxu0 %v637
    %945 = vmatpush1.bf16.msra.mxu0 %v636
    %946 = vmatprep.subr.bf16.mxu0 %v641
    %947 = vmatpush1.bf16.msra.mxu0 %v640
    %948 = vmatprep.mubr.bf16.mxu0 %v187
    %949 = vmatmul.mubr.bf16.gmra.mrb[0].mxu0 %v186
    %v950 = vpop.f32.mrb[0].mxu0
    %v951 = vadd.f32 %v171, %v950
    %v952 = vpop.f32.mrb[0].mxu0
    %v953 = vadd.f32 %v175, %v952
    %v954 = vpop.f32.mrb[0].mxu0
    %v955 = vpop.f32.mrb[0].mxu0
    %956 = vdwg.mxu0
    %957 = vmatprep.subr.bf16.mxu0 %v645
    %958 = vmatpush1.bf16.msra.mxu0 %v644
    %959 = vmatprep.subr.bf16.mxu0 %v649
    %960 = vmatpush1.bf16.msra.mxu0 %v648
    %961 = vmatprep.subr.bf16.mxu0 %v653
    %962 = vmatpush1.bf16.msra.mxu0 %v652
    %963 = vmatprep.subr.bf16.mxu0 %v657
    %964 = vmatpush1.bf16.msra.mxu0 %v656
    %965 = vmatprep.subr.bf16.mxu0 %v661
    %966 = vmatpush1.bf16.msra.mxu0 %v660
    %967 = vmatprep.subr.bf16.mxu0 %v665
    %968 = vmatpush1.bf16.msra.mxu0 %v664
    %969 = vmatprep.subr.bf16.mxu0 %v669
    %970 = vmatpush1.bf16.msra.mxu0 %v668
    %971 = vmatprep.subr.bf16.mxu0 %v673
    %972 = vmatpush1.bf16.msra.mxu0 %v672
    %973 = vmatprep.subr.bf16.mxu0 %v677
    %974 = vmatpush1.bf16.msra.mxu0 %v676
    %975 = vmatprep.subr.bf16.mxu0 %v681
    %976 = vmatpush1.bf16.msra.mxu0 %v680
    %977 = vmatprep.subr.bf16.mxu0 %v685
    %978 = vmatpush1.bf16.msra.mxu0 %v684
    %979 = vmatprep.subr.bf16.mxu0 %v689
    %980 = vmatpush1.bf16.msra.mxu0 %v688
    %981 = vmatprep.subr.bf16.mxu0 %v693
    %982 = vmatpush1.bf16.msra.mxu0 %v692
    %983 = vmatprep.subr.bf16.mxu0 %v697
    %984 = vmatpush1.bf16.msra.mxu0 %v696
    %985 = vmatprep.subr.bf16.mxu0 %v701
    %986 = vmatpush1.bf16.msra.mxu0 %v700
    %987 = vmatprep.subr.bf16.mxu0 %v705
    %988 = vmatpush1.bf16.msra.mxu0 %v704
    %989 = vmatprep.mubr.bf16.mxu0 %v189
    %990 = vmatmul.mubr.bf16.gmra.mrb[0].mxu0 %v188
    %v991 = vpop.f32.mrb[0].mxu0
    %v992 = vadd.f32 %v951, %v991
    %v993 = vpop.f32.mrb[0].mxu0
    %v994 = vadd.f32 %v953, %v993
    %v995 = vpop.f32.mrb[0].mxu0
    %v996 = vpop.f32.mrb[0].mxu0
    %997 = vdwg.mxu0
    %v998 = vmax.f32 %v910, 0.0
    %v999 = vmax.f32 %v912, 0.0
    %v1000 = vmax.f32 %v992, 0.0
    %v1001 = vmax.f32 %v994, 0.0
    %v1002 = vpack.c.bf16 %v998, %v998
    %v1003 = vpack.c.bf16 %v999, %v999
    %v1004 = vpack.c.bf16 %v1000, %v1000
    %v1005 = vpack.c.bf16 %v1001, %v1001
    %v1006 = vld [vmem:[%s3] sm:$0xf]
    %v1007 = vld [vmem:[%s3 + $0x4] sm:$0xf]
    %v1008 = vld [vmem:[%s3 + $0x8] sm:$0xf]
    %v1009 = vld [vmem:[%s3 + $0xc] sm:$0xf]
    %v1010 = vld [vmem:[%s3 + $0x10] sm:$0xf]
    %v1011 = vld [vmem:[%s3 + $0x14] sm:$0xf]
    %v1012 = vld [vmem:[%s3 + $0x18] sm:$0xf]
    %v1013 = vld [vmem:[%s3 + $0x1c] sm:$0xf]
    %v1014 = vld [vmem:[%s3 + $0x20] sm:$0xf]
    %v1015 = vld [vmem:[%s3 + $0x24] sm:$0xf]
    %v1016 = vld [vmem:[%s3 + $0x28] sm:$0xf]
    %v1017 = vld [vmem:[%s3 + $0x2c] sm:$0xf]
    %v1018 = vld [vmem:[%s3 + $0x30] sm:$0xf]
    %v1019 = vld [vmem:[%s3 + $0x34] sm:$0xf]
    %v1020 = vld [vmem:[%s3 + $0x38] sm:$0xf]
    %v1021 = vld [vmem:[%s3 + $0x3c] sm:$0xf]
    %v1022 = vld [vmem:[%s3 + $0x40] sm:$0xf]
    %v1023 = vld [vmem:[%s3 + $0x44] sm:$0xf]
    %v1024 = vld [vmem:[%s3 + $0x48] sm:$0xf]
    %v1025 = vld [vmem:[%s3 + $0x4c] sm:$0xf]
    %v1026 = vld [vmem:[%s3 + $0x50] sm:$0xf]
    %v1027 = vld [vmem:[%s3 + $0x54] sm:$0xf]
    %v1028 = vld [vmem:[%s3 + $0x58] sm:$0xf]
    %v1029 = vld [vmem:[%s3 + $0x5c] sm:$0xf]
    %v1030 = vld [vmem:[%s3 + $0x60] sm:$0xf]
    %v1031 = vld [vmem:[%s3 + $0x64] sm:$0xf]
    %v1032 = vld [vmem:[%s3 + $0x68] sm:$0xf]
    %v1033 = vld [vmem:[%s3 + $0x6c] sm:$0xf]
    %v1034 = vld [vmem:[%s3 + $0x70] sm:$0xf]
    %v1035 = vld [vmem:[%s3 + $0x74] sm:$0xf]
    %v1036 = vld [vmem:[%s3 + $0x78] sm:$0xf]
    %v1037 = vld [vmem:[%s3 + $0x7c] sm:$0xf]
    %v1038 = vld [vmem:[%s3 + $0x80] sm:$0xf]
    %v1039 = vld [vmem:[%s3 + $0x84] sm:$0xf]
    %v1040 = vld [vmem:[%s3 + $0x88] sm:$0xf]
    %v1041 = vld [vmem:[%s3 + $0x8c] sm:$0xf]
    %v1042 = vld [vmem:[%s3 + $0x90] sm:$0xf]
    %v1043 = vld [vmem:[%s3 + $0x94] sm:$0xf]
    %v1044 = vld [vmem:[%s3 + $0x98] sm:$0xf]
    %v1045 = vld [vmem:[%s3 + $0x9c] sm:$0xf]
    %v1046 = vld [vmem:[%s3 + $0xa0] sm:$0xf]
    %v1047 = vld [vmem:[%s3 + $0xa4] sm:$0xf]
    %v1048 = vld [vmem:[%s3 + $0xa8] sm:$0xf]
    %v1049 = vld [vmem:[%s3 + $0xac] sm:$0xf]
    %v1050 = vld [vmem:[%s3 + $0xb0] sm:$0xf]
    %v1051 = vld [vmem:[%s3 + $0xb4] sm:$0xf]
    %v1052 = vld [vmem:[%s3 + $0xb8] sm:$0xf]
    %v1053 = vld [vmem:[%s3 + $0xbc] sm:$0xf]
    %v1054 = vld [vmem:[%s3 + $0xc0] sm:$0xf]
    %v1055 = vld [vmem:[%s3 + $0xc4] sm:$0xf]
    %v1056 = vld [vmem:[%s3 + $0xc8] sm:$0xf]
    %v1057 = vld [vmem:[%s3 + $0xcc] sm:$0xf]
    %v1058 = vld [vmem:[%s3 + $0xd0] sm:$0xf]
    %v1059 = vld [vmem:[%s3 + $0xd4] sm:$0xf]
    %v1060 = vld [vmem:[%s3 + $0xd8] sm:$0xf]
    %v1061 = vld [vmem:[%s3 + $0xdc] sm:$0xf]
    %v1062 = vld [vmem:[%s3 + $0xe0] sm:$0xf]
    %v1063 = vld [vmem:[%s3 + $0xe4] sm:$0xf]
    %v1064 = vld [vmem:[%s3 + $0xe8] sm:$0xf]
    %v1065 = vld [vmem:[%s3 + $0xec] sm:$0xf]
    %v1066 = vld [vmem:[%s3 + $0xf0] sm:$0xf]
    %v1067 = vld [vmem:[%s3 + $0xf4] sm:$0xf]
    %v1068 = vld [vmem:[%s3 + $0xf8] sm:$0xf]
    %v1069 = vld [vmem:[%s3 + $0xfc] sm:$0xf]
    %v1070 = vld [vmem:[%s4] sm:$0x1]
    %v1072 = vlaneseq
    %v1073 = vshrl.u32 %v1072, 7
    %v1074 = vsub.s32 0, %v1073
    %v1075 = vrot.slane %v1070, %v1074
    %v1141 = vunpack.c.l.b16 %v1006
    %v1142 = vunpack.c.l.b16 %v1007
    %v1143 = vunpack.c.l.b16 %v1008
    %v1144 = vunpack.c.l.b16 %v1009
    %v1145 = vunpack.c.l.b16 %v1010
    %v1146 = vunpack.c.l.b16 %v1011
    %v1147 = vunpack.c.l.b16 %v1012
    %v1148 = vunpack.c.l.b16 %v1013
    %v1149 = vunpack.c.l.b16 %v1014
    %v1150 = vunpack.c.l.b16 %v1015
    %v1151 = vunpack.c.l.b16 %v1016
    %v1152 = vunpack.c.l.b16 %v1017
    %v1153 = vunpack.c.l.b16 %v1018
    %v1154 = vunpack.c.l.b16 %v1019
    %v1155 = vunpack.c.l.b16 %v1020
    %v1156 = vunpack.c.l.b16 %v1021
    %v1157 = vunpack.c.l.b16 %v1022
    %v1158 = vunpack.c.l.b16 %v1023
    %v1159 = vunpack.c.l.b16 %v1024
    %v1160 = vunpack.c.l.b16 %v1025
    %v1161 = vunpack.c.l.b16 %v1026
    %v1162 = vunpack.c.l.b16 %v1027
    %v1163 = vunpack.c.l.b16 %v1028
    %v1164 = vunpack.c.l.b16 %v1029
    %v1165 = vunpack.c.l.b16 %v1030
    %v1166 = vunpack.c.l.b16 %v1031
    %v1167 = vunpack.c.l.b16 %v1032
    %v1168 = vunpack.c.l.b16 %v1033
    %v1169 = vunpack.c.l.b16 %v1034
    %v1170 = vunpack.c.l.b16 %v1035
    %v1171 = vunpack.c.l.b16 %v1036
    %v1172 = vunpack.c.l.b16 %v1037
    %v1173 = vunpack.c.l.b16 %v1038
    %v1174 = vunpack.c.l.b16 %v1039
    %v1175 = vunpack.c.l.b16 %v1040
    %v1176 = vunpack.c.l.b16 %v1041
    %v1177 = vunpack.c.l.b16 %v1042
    %v1178 = vunpack.c.l.b16 %v1043
    %v1179 = vunpack.c.l.b16 %v1044
    %v1180 = vunpack.c.l.b16 %v1045
    %v1181 = vunpack.c.l.b16 %v1046
    %v1182 = vunpack.c.l.b16 %v1047
    %v1183 = vunpack.c.l.b16 %v1048
    %v1184 = vunpack.c.l.b16 %v1049
    %v1185 = vunpack.c.l.b16 %v1050
    %v1186 = vunpack.c.l.b16 %v1051
    %v1187 = vunpack.c.l.b16 %v1052
    %v1188 = vunpack.c.l.b16 %v1053
    %v1189 = vunpack.c.l.b16 %v1054
    %v1190 = vunpack.c.l.b16 %v1055
    %v1191 = vunpack.c.l.b16 %v1056
    %v1192 = vunpack.c.l.b16 %v1057
    %v1193 = vunpack.c.l.b16 %v1058
    %v1194 = vunpack.c.l.b16 %v1059
    %v1195 = vunpack.c.l.b16 %v1060
    %v1196 = vunpack.c.l.b16 %v1061
    %v1197 = vunpack.c.l.b16 %v1062
    %v1198 = vunpack.c.l.b16 %v1063
    %v1199 = vunpack.c.l.b16 %v1064
    %v1200 = vunpack.c.l.b16 %v1065
    %v1201 = vunpack.c.l.b16 %v1066
    %v1202 = vunpack.c.l.b16 %v1067
    %v1203 = vunpack.c.l.b16 %v1068
    %v1204 = vunpack.c.l.b16 %v1069
    %v1205 = vpack.c.b16 %v1142, %v1141
    %v1206 = vpack.c.b16 %v1144, %v1143
    %v1207 = vpack.c.b16 %v1146, %v1145
    %v1208 = vpack.c.b16 %v1148, %v1147
    %v1209 = vpack.c.b16 %v1150, %v1149
    %v1210 = vpack.c.b16 %v1152, %v1151
    %v1211 = vpack.c.b16 %v1154, %v1153
    %v1212 = vpack.c.b16 %v1156, %v1155
    %v1213 = vpack.c.b16 %v1158, %v1157
    %v1214 = vpack.c.b16 %v1160, %v1159
    %v1215 = vpack.c.b16 %v1162, %v1161
    %v1216 = vpack.c.b16 %v1164, %v1163
    %v1217 = vpack.c.b16 %v1166, %v1165
    %v1218 = vpack.c.b16 %v1168, %v1167
    %v1219 = vpack.c.b16 %v1170, %v1169
    %v1220 = vpack.c.b16 %v1172, %v1171
    %v1221 = vpack.c.b16 %v1174, %v1173
    %v1222 = vpack.c.b16 %v1176, %v1175
    %v1223 = vpack.c.b16 %v1178, %v1177
    %v1224 = vpack.c.b16 %v1180, %v1179
    %v1225 = vpack.c.b16 %v1182, %v1181
    %v1226 = vpack.c.b16 %v1184, %v1183
    %v1227 = vpack.c.b16 %v1186, %v1185
    %v1228 = vpack.c.b16 %v1188, %v1187
    %v1229 = vpack.c.b16 %v1190, %v1189
    %v1230 = vpack.c.b16 %v1192, %v1191
    %v1231 = vpack.c.b16 %v1194, %v1193
    %v1232 = vpack.c.b16 %v1196, %v1195
    %v1233 = vpack.c.b16 %v1198, %v1197
    %v1234 = vpack.c.b16 %v1200, %v1199
    %v1235 = vpack.c.b16 %v1202, %v1201
    %v1236 = vpack.c.b16 %v1204, %v1203
    %1269 = vmatprep.subr.bf16.mxu0 0
    %1270 = vmatpush1.bf16.msra.mxu0 %v1205
    %1271 = vmatprep.subr.bf16.mxu0 0
    %1272 = vmatpush1.bf16.msra.mxu0 %v1206
    %1273 = vmatprep.subr.bf16.mxu0 0
    %1274 = vmatpush1.bf16.msra.mxu0 %v1207
    %1275 = vmatprep.subr.bf16.mxu0 0
    %1276 = vmatpush1.bf16.msra.mxu0 %v1208
    %1277 = vmatprep.subr.bf16.mxu0 0
    %1278 = vmatpush1.bf16.msra.mxu0 %v1209
    %1279 = vmatprep.subr.bf16.mxu0 0
    %1280 = vmatpush1.bf16.msra.mxu0 %v1210
    %1281 = vmatprep.subr.bf16.mxu0 0
    %1282 = vmatpush1.bf16.msra.mxu0 %v1211
    %1283 = vmatprep.subr.bf16.mxu0 0
    %1284 = vmatpush1.bf16.msra.mxu0 %v1212
    %1285 = vmatprep.subr.bf16.mxu0 0
    %1286 = vmatpush1.bf16.msra.mxu0 %v1213
    %1287 = vmatprep.subr.bf16.mxu0 0
    %1288 = vmatpush1.bf16.msra.mxu0 %v1214
    %1289 = vmatprep.subr.bf16.mxu0 0
    %1290 = vmatpush1.bf16.msra.mxu0 %v1215
    %1291 = vmatprep.subr.bf16.mxu0 0
    %1292 = vmatpush1.bf16.msra.mxu0 %v1216
    %1293 = vmatprep.subr.bf16.mxu0 0
    %1294 = vmatpush1.bf16.msra.mxu0 %v1217
    %1295 = vmatprep.subr.bf16.mxu0 0
    %1296 = vmatpush1.bf16.msra.mxu0 %v1218
    %1297 = vmatprep.subr.bf16.mxu0 0
    %1298 = vmatpush1.bf16.msra.mxu0 %v1219
    %1299 = vmatprep.subr.bf16.mxu0 0
    %1300 = vmatpush1.bf16.msra.mxu0 %v1220
    %1301 = vmatprep.mubr.bf16.mxu0 %v1003
    %1302 = vmatmul.mubr.bf16.gmra.mrb[0].mxu0 %v1002
    %v1303 = vpop.f32.mrb[0].mxu0
    %v1304 = vadd.f32 %v1075, %v1303
    %v1305 = vpop.f32.mrb[0].mxu0
    %v1306 = vpop.f32.mrb[0].mxu0
    %v1307 = vpop.f32.mrb[0].mxu0
    %1308 = vdwg.mxu0
    %1309 = vmatprep.subr.bf16.mxu0 0
    %1310 = vmatpush1.bf16.msra.mxu0 %v1221
    %1311 = vmatprep.subr.bf16.mxu0 0
    %1312 = vmatpush1.bf16.msra.mxu0 %v1222
    %1313 = vmatprep.subr.bf16.mxu0 0
    %1314 = vmatpush1.bf16.msra.mxu0 %v1223
    %1315 = vmatprep.subr.bf16.mxu0 0
    %1316 = vmatpush1.bf16.msra.mxu0 %v1224
    %1317 = vmatprep.subr.bf16.mxu0 0
    %1318 = vmatpush1.bf16.msra.mxu0 %v1225
    %1319 = vmatprep.subr.bf16.mxu0 0
    %1320 = vmatpush1.bf16.msra.mxu0 %v1226
    %1321 = vmatprep.subr.bf16.mxu0 0
    %1322 = vmatpush1.bf16.msra.mxu0 %v1227
    %1323 = vmatprep.subr.bf16.mxu0 0
    %1324 = vmatpush1.bf16.msra.mxu0 %v1228
    %1325 = vmatprep.subr.bf16.mxu0 0
    %1326 = vmatpush1.bf16.msra.mxu0 %v1229
    %1327 = vmatprep.subr.bf16.mxu0 0
    %1328 = vmatpush1.bf16.msra.mxu0 %v1230
    %1329 = vmatprep.subr.bf16.mxu0 0
    %1330 = vmatpush1.bf16.msra.mxu0 %v1231
    %1331 = vmatprep.subr.bf16.mxu0 0
    %1332 = vmatpush1.bf16.msra.mxu0 %v1232
    %1333 = vmatprep.subr.bf16.mxu0 0
    %1334 = vmatpush1.bf16.msra.mxu0 %v1233
    %1335 = vmatprep.subr.bf16.mxu0 0
    %1336 = vmatpush1.bf16.msra.mxu0 %v1234
    %1337 = vmatprep.subr.bf16.mxu0 0
    %1338 = vmatpush1.bf16.msra.mxu0 %v1235
    %1339 = vmatprep.subr.bf16.mxu0 0
    %1340 = vmatpush1.bf16.msra.mxu0 %v1236
    %1341 = vmatprep.mubr.bf16.mxu0 %v1005
    %1342 = vmatmul.mubr.bf16.gmra.mrb[0].mxu0 %v1004
    %v1343 = vpop.f32.mrb[0].mxu0
    %v1344 = vadd.f32 %v1304, %v1343
    %v1345 = vpop.f32.mrb[0].mxu0
    %v1346 = vpop.f32.mrb[0].mxu0
    %v1347 = vpop.f32.mrb[0].mxu0
    %1348 = vdwg.mxu0
    %v1349 = vmax.f32 %v1344, 0.0
    %v1350 = vpack.c.bf16 %v1349, %v1349
    %v1351 = vld [vmem:[%s5] sm:$0xf]
    %v1352 = vld [vmem:[%s5 + $0x4] sm:$0xf]
    %v1353 = vld [vmem:[%s5 + $0x8] sm:$0xf]
    %v1354 = vld [vmem:[%s5 + $0xc] sm:$0xf]
    %v1355 = vld [vmem:[%s5 + $0x10] sm:$0xf]
    %v1356 = vld [vmem:[%s5 + $0x14] sm:$0xf]
    %v1357 = vld [vmem:[%s5 + $0x18] sm:$0xf]
    %v1358 = vld [vmem:[%s5 + $0x1c] sm:$0xf]
    %v1359 = vld [vmem:[%s5 + $0x20] sm:$0xf]
    %v1360 = vld [vmem:[%s5 + $0x24] sm:$0xf]
    %v1361 = vld [vmem:[%s5 + $0x28] sm:$0xf]
    %v1362 = vld [vmem:[%s5 + $0x2c] sm:$0xf]
    %v1363 = vld [vmem:[%s5 + $0x30] sm:$0xf]
    %v1364 = vld [vmem:[%s5 + $0x34] sm:$0xf]
    %v1365 = vld [vmem:[%s5 + $0x38] sm:$0xf]
    %v1366 = vld [vmem:[%s5 + $0x3c] sm:$0xf]
    %v1367 = vld [vmem:[%s6] sm:$0x1]
    %v1369 = vlaneseq
    %v1370 = vshrl.u32 %v1369, 7
    %v1371 = vsub.s32 0, %v1370
    %v1372 = vrot.slane %v1367, %v1371
    %v1390 = vunpack.c.l.b16 %v1351
    %v1391 = vunpack.c.l.b16 %v1352
    %v1392 = vunpack.c.l.b16 %v1353
    %v1393 = vunpack.c.l.b16 %v1354
    %v1394 = vunpack.c.l.b16 %v1355
    %v1395 = vunpack.c.l.b16 %v1356
    %v1396 = vunpack.c.l.b16 %v1357
    %v1397 = vunpack.c.l.b16 %v1358
    %v1398 = vunpack.c.l.b16 %v1359
    %v1399 = vunpack.c.l.b16 %v1360
    %v1400 = vunpack.c.l.b16 %v1361
    %v1401 = vunpack.c.l.b16 %v1362
    %v1402 = vunpack.c.l.b16 %v1363
    %v1403 = vunpack.c.l.b16 %v1364
    %v1404 = vunpack.c.l.b16 %v1365
    %v1405 = vunpack.c.l.b16 %v1366
    %v1406 = vpack.c.b16 %v1391, %v1390
    %v1407 = vpack.c.b16 %v1393, %v1392
    %v1408 = vpack.c.b16 %v1395, %v1394
    %v1409 = vpack.c.b16 %v1397, %v1396
    %v1410 = vpack.c.b16 %v1399, %v1398
    %v1411 = vpack.c.b16 %v1401, %v1400
    %v1412 = vpack.c.b16 %v1403, %v1402
    %v1413 = vpack.c.b16 %v1405, %v1404
    %1422 = vmatprep.subr.bf16.mxu0 0
    %1423 = vmatpush1.bf16.msra.mxu0 %v1406
    %1424 = vmatprep.subr.bf16.mxu0 0
    %1425 = vmatpush1.bf16.msra.mxu0 %v1407
    %1426 = vmatprep.subr.bf16.mxu0 0
    %1427 = vmatpush1.bf16.msra.mxu0 %v1408
    %1428 = vmatprep.subr.bf16.mxu0 0
    %1429 = vmatpush1.bf16.msra.mxu0 %v1409
    %1430 = vmatprep.subr.bf16.mxu0 0
    %1431 = vmatpush1.bf16.msra.mxu0 %v1410
    %1432 = vmatprep.subr.bf16.mxu0 0
    %1433 = vmatpush1.bf16.msra.mxu0 %v1411
    %1434 = vmatprep.subr.bf16.mxu0 0
    %1435 = vmatpush1.bf16.msra.mxu0 %v1412
    %1436 = vmatprep.subr.bf16.mxu0 0
    %1437 = vmatpush1.bf16.msra.mxu0 %v1413
    %1438 = vmatprep.subr.bf16.mxu0 0
    %1439 = vmatpush1.bf16.msra.mxu0 0
    %1440 = vmatprep.subr.bf16.mxu0 0
    %1441 = vmatpush1.bf16.msra.mxu0 0
    %1442 = vmatprep.subr.bf16.mxu0 0
    %1443 = vmatpush1.bf16.msra.mxu0 0
    %1444 = vmatprep.subr.bf16.mxu0 0
    %1445 = vmatpush1.bf16.msra.mxu0 0
    %1446 = vmatprep.subr.bf16.mxu0 0
    %1447 = vmatpush1.bf16.msra.mxu0 0
    %1448 = vmatprep.subr.bf16.mxu0 0
    %1449 = vmatpush1.bf16.msra.mxu0 0
    %1450 = vmatprep.subr.bf16.mxu0 0
    %1451 = vmatpush1.bf16.msra.mxu0 0
    %1452 = vmatprep.subr.bf16.mxu0 0
    %1453 = vmatpush1.bf16.msra.mxu0 0
    %1454 = vmatprep.mubr.bf16.mxu0 0
    %1455 = vmatmul.mubr.bf16.gmra.mrb[0].mxu0 %v1350
    %v1456 = vpop.f32.mrb[0].mxu0
    %v1457 = vadd.f32 %v1372, %v1456
    %v1458 = vpop.f32.mrb[0].mxu0
    %v1459 = vpop.f32.mrb[0].mxu0
    %v1460 = vpop.f32.mrb[0].mxu0
    %1461 = vdwg.mxu0
    %1462 = vst [vmem:[#allocation2] sm:$0xff] %v1457
    // Predicated region
    $region30: #{dqn_forward.1} parent=1 // pred_check
      _
    $region31: #{dqn_forward.1} parent=1 // pred_check_branch
      %1464 = sbr.rel (0) target = $region33
    $region32: #{dqn_forward.1} parent=1 // pred_region
      %s1466 = ssub.s32 128, 128
      %1467 = vsyncadd [#allocation3], %s1466
      %s1469 = sshll.u32 [#allocation2], 4
      %s1470 = int_to_ptr.vmem [resolvable:$true] %s1469
      %1472 = dma.vmem_to_hbm [thread:$0]  %s1470, 128, %s7, [#allocation3]
    $region33: #{dqn_forward.1} parent=1 // pred_fallthru
      _
    // Predicated region
    $region34: #{dqn_forward.1} parent=1 // pred_check
      _
    $region35: #{dqn_forward.1} parent=1 // pred_check_branch
      %1474 = sbr.rel (0) target = $region37
    $region36: #{dqn_forward.1} parent=1 // pred_region
      %1475 = dma.done [#allocation3], 128
    $region37: #{dqn_forward.1} parent=1 // pred_fallthru
      _
    %1476 = vsyncpa [#allocation3], 1

</llo_original>
